<compile_context>
chip_gen: v5e
topology: v5e:2x2
jax: 0.10.0
libtpu: 0.0.40
codegen_flags: <defaults>
</compile_context>

<pallas_src>
import functools

import jax
import jax.numpy as jnp
from jax.experimental import pallas as pl
from jax.experimental.pallas import tpu as pltpu

_LANES = 128
_ACC_ROWS = 32   # accumulator block rows -> 4 independent f32 vregs per sum


def _round_up(n, m):
    return ((n + m - 1) // m) * m


def _device_kind():
    try:
        return jax.devices()[0].device_kind.lower()
    except Exception:
        return ""


def _default_tile_rows():
    dk = _device_kind()
    if "v5 lite" in dk or "v5e" in dk or "v5lite" in dk:
        return 2048   # v5e: 16 MiB default scoped VMEM -> 2 inputs x 2 bufs x 1 MiB
    if "v6" in dk or "7" in dk:
        return 8192   # v6e/v7x: 32 MiB default scoped VMEM -> 16 MiB stream buffers
    return 4096       # unknown chip: conservative 8 MiB of stream buffers


def _default_num_splits():
    # 2-way "parallel" accumulator split only on multi-TensorCore chips (v7x);
    # on 1-TC chips it is just a serial outer loop, so keep it at 1.
    dk = _device_kind()
    return 2 if "7" in dk else 1


def _iou_sums_kernel(x_ref, t_ref, inter_ref, total_ref, *,
                     valid_rows, tiles_per_split, ragged):
    """Accumulate lane/sublane-wise partial sums of x*t and x+t for one tile.

    x_ref, t_ref:         (tile_rows, 128) input tiles, native dtype.
    inter_ref, total_ref: (32, 128) f32 running partial sums (per split).
    """
    c = pl.program_id(0)            # accumulator split ("parallel")
    i = pl.program_id(1)            # reduction over tiles within the split

    @pl.when(i == 0)
    def _init():
        inter_ref[...] = jnp.zeros_like(inter_ref)
        total_ref[...] = jnp.zeros_like(total_ref)

    tile_rows = x_ref.shape[0]
    n_chunks = tile_rows // _ACC_ROWS

    if ragged:
        # Rows still valid in this tile (>= tile_rows for all but the global
        # last tile; in (0, tile_rows) for the last one).  Out-of-bounds block
        # regions are NOT zero-filled by Pallas, so masking is required.
        gt = c * tiles_per_split + i
        limit = jnp.int32(valid_rows) - gt * tile_rows
        row_in_chunk = jax.lax.broadcasted_iota(jnp.int32, (_ACC_ROWS, _LANES), 0)

    def body(ci, carry):
        acc_i, acc_t = carry
        r0 = pl.multiple_of(ci * _ACC_ROWS, _ACC_ROWS)
        xs = x_ref[pl.ds(r0, _ACC_ROWS), :].astype(jnp.float32)
        ts = t_ref[pl.ds(r0, _ACC_ROWS), :].astype(jnp.float32)
        if ragged:
            mask = (row_in_chunk + r0) < limit
            xs = jnp.where(mask, xs, 0.0)
            ts = jnp.where(mask, ts, 0.0)
        return acc_i + xs * ts, acc_t + xs + ts

    zero = jnp.zeros((_ACC_ROWS, _LANES), jnp.float32)
    acc_i, acc_t = jax.lax.fori_loop(
        0, n_chunks, body, (zero, zero),
        unroll=4 if n_chunks % 4 == 0 else None)

    inter_ref[...] += acc_i
    total_ref[...] += acc_t


def binary_iou_loss(inputs, targets, smooth=1.0, *, tile_rows=None, n_splits=None):
    """JAX/Pallas equivalent of BinaryIoULoss.forward (weight is unused, as in
    the reference)."""
    p = inputs.size
    assert targets.size == p, "inputs/targets must have the same element count"

    x = inputs.reshape(-1)
    t = targets.reshape(-1)

    # bool streams as 1-byte int8 (same width); everything else keeps its
    # native dtype and is cast to f32 per-tile inside the kernel.
    if x.dtype == jnp.bool_:
        x = x.astype(jnp.int8)
    if t.dtype == jnp.bool_:
        t = t.astype(jnp.int8)

    rows = p // _LANES            # complete 128-lane rows for the kernel
    tail = p - rows * _LANES      # <128 leftover elements -> tiny JAX epilogue

    if rows == 0:
        # Input smaller than one lane row: plain JAX.
        xf = x.astype(jnp.float32)
        tf = t.astype(jnp.float32)
        intersection = jnp.sum(xf * tf)
        total = jnp.sum(xf + tf)
    else:
        if tile_rows is None:
            tile_rows = _default_tile_rows()
        tr = max(_ACC_ROWS, min(_round_up(tile_rows, _ACC_ROWS),
                                _round_up(rows, _ACC_ROWS)))
        total_tiles = pl.cdiv(rows, tr)

        if n_splits is None:
            n_splits = _default_num_splits()
        if n_splits > 1 and (total_tiles < n_splits or total_tiles % n_splits != 0):
            n_splits = 1          # avoid fully out-of-bounds tiles
        tiles_per_split = total_tiles // n_splits

        ragged = (total_tiles * tr != rows)

        if tail == 0:
            x2 = x.reshape(rows, _LANES)      # free row-major reshape, no copy
            t2 = t.reshape(rows, _LANES)
        else:
            # Rare (p not a multiple of 128): the prefix slice materializes one
            # extra copy of the aligned prefix.
            # TODO(synk): avoidable with a manual-DMA (memory_space=pl.ANY)
            # 1-D kernel if this path ever matters for performance.
            x2 = x[: rows * _LANES].reshape(rows, _LANES)
            t2 = t[: rows * _LANES].reshape(rows, _LANES)

        grid = (n_splits, tiles_per_split)
        in_map = lambda c, i: (c * tiles_per_split + i, 0)
        out_map = lambda c, i: (c, 0)

        kernel = functools.partial(
            _iou_sums_kernel,
            valid_rows=rows,
            tiles_per_split=tiles_per_split,
            ragged=ragged,
        )

        inter_acc, total_acc = pl.pallas_call(
            kernel,
            out_shape=(
                jax.ShapeDtypeStruct((n_splits * _ACC_ROWS, _LANES), jnp.float32),
                jax.ShapeDtypeStruct((n_splits * _ACC_ROWS, _LANES), jnp.float32),
            ),
            grid_spec=pltpu.PrefetchScalarGridSpec(
                num_scalar_prefetch=0,
                grid=grid,
                in_specs=[
                    pl.BlockSpec((tr, _LANES), in_map),
                    pl.BlockSpec((tr, _LANES), in_map),
                ],
                out_specs=[
                    pl.BlockSpec((_ACC_ROWS, _LANES), out_map),
                    pl.BlockSpec((_ACC_ROWS, _LANES), out_map),
                ],
            ),
            compiler_params=pltpu.CompilerParams(
                dimension_semantics=("parallel", "arbitrary"),
            ),
        )(x2, t2)

        # Tiny epilogue: cross-split + cross-lane reduce in plain JAX.
        intersection = jnp.sum(inter_acc)
        total = jnp.sum(total_acc)

        if tail:
            xt = x[rows * _LANES:].astype(jnp.float32)
            tt = t[rows * _LANES:].astype(jnp.float32)
            intersection = intersection + jnp.sum(xt * tt)
            total = total + jnp.sum(xt + tt)

    union = total - intersection
    iou = (intersection + smooth) / (union + smooth)
    return 1.0 - iou


def _reference_loss(inputs, targets, smooth=1.0):
    """Plain-JAX replica of the PyTorch forward, for a sanity check."""
    x = inputs.reshape(-1).astype(jnp.float32)
    t = targets.reshape(-1).astype(jnp.float32)
    intersection = jnp.sum(x * t)
    total = jnp.sum(x + t)
    union = total - intersection
    iou = (intersection + smooth) / (union + smooth)
    return 1.0 - iou


if __name__ == "__main__":
    key = jax.random.PRNGKey(0)
    k1, k2, k3, k4 = jax.random.split(key, 4)

    # Small shape consistent with the module: (N, C, H, W) probabilities vs
    # binary masks.  8192 elements = 64 lane-rows -> clean (non-ragged) path.
    shape = (2, 4, 32, 32)
    inputs = jax.nn.sigmoid(jax.random.normal(k1, shape, dtype=jnp.float32))
    targets = (jax.random.uniform(k2, shape) > 0.5).astype(jnp.float32)

    loss = jax.block_until_ready(binary_iou_loss(inputs, targets))
    ref = jax.block_until_ready(_reference_loss(inputs, targets))
    assert jnp.allclose(loss, ref, rtol=1e-4, atol=1e-5), (loss, ref)

    # Ragged case: 5959 elements = 46 lane-rows + 71-element tail.  Exercises
    # the in-kernel last-tile mask and the tiny JAX tail reduction.
    shape2 = (1, 1, 59, 101)
    inputs2 = jax.nn.sigmoid(jax.random.normal(k3, shape2, dtype=jnp.float32))
    targets2 = (jax.random.uniform(k4, shape2) > 0.5).astype(jnp.float32)
    loss2 = jax.block_until_ready(binary_iou_loss(inputs2, targets2, tile_rows=32))
    ref2 = jax.block_until_ready(_reference_loss(inputs2, targets2))
    assert jnp.allclose(loss2, ref2, rtol=1e-4, atol=1e-5), (loss2, ref2)

    # Native-dtype streaming: bf16 inputs are cast to f32 per-tile in-kernel.
    loss3 = jax.block_until_ready(
        binary_iou_loss(inputs.astype(jnp.bfloat16), targets.astype(jnp.bfloat16)))
    ref3 = jax.block_until_ready(
        _reference_loss(inputs.astype(jnp.bfloat16), targets.astype(jnp.bfloat16)))
    assert jnp.allclose(loss3, ref3, rtol=1e-3, atol=1e-3), (loss3, ref3)

    print("KERNEL_OK")
</pallas_src>

<mosaic_0001>
module attributes {stable_mosaic.version = 11 : i64} {
  func.func @_iou_sums_kernel(%arg0: i32, %arg1: i32, %arg2: memref<64x128xf32, #tpu.memory_space<vmem>>, %arg3: memref<64x128xf32, #tpu.memory_space<vmem>>, %arg4: memref<32x128xf32, #tpu.memory_space<vmem>>, %arg5: memref<32x128xf32, #tpu.memory_space<vmem>>) attributes {dimension_semantics = [#tpu.dimension_semantics<parallel>, #tpu.dimension_semantics<arbitrary>], iteration_bounds = array<i64: 1, 1>, scalar_prefetch = 0 : i64, scratch_operands = 0 : i64, tpu.core_type = #tpu.core_type<tc>, window_params = [{transform_indices = @transform_0, window_bounds = array<i64: 64, 128>}, {transform_indices = @transform_1, window_bounds = array<i64: 64, 128>}, {transform_indices = @transform_2, window_bounds = array<i64: 32, 128>}, {transform_indices = @transform_3, window_bounds = array<i64: 32, 128>}]} {
    %c0_i32 = arith.constant 0 : i32
    %0 = arith.cmpi eq, %arg1, %c0_i32 : i32
    %1 = arith.extui %0 : i1 to i32
    %c0_i32_0 = arith.constant 0 : i32
    %2 = arith.cmpi ne, %1, %c0_i32_0 : i32
    scf.if %2 {
      %cst_10 = arith.constant 0.000000e+00 : f32
      %12 = vector.broadcast %cst_10 : f32 to vector<32x128xf32>
      %c0_11 = arith.constant 0 : index
      %c0_12 = arith.constant 0 : index
      %13 = vector.load %arg4[%c0_11, %c0_12] : memref<32x128xf32, #tpu.memory_space<vmem>>, vector<32x128xf32>
      tpu.vector_store %arg4[%c0_11, %c0_12], %12 {strides = array<i32>} : memref<32x128xf32, #tpu.memory_space<vmem>>, vector<32x128xf32>,
      %cst_13 = arith.constant 0.000000e+00 : f32
      %14 = vector.broadcast %cst_13 : f32 to vector<32x128xf32>
      %c0_14 = arith.constant 0 : index
      %c0_15 = arith.constant 0 : index
      %15 = vector.load %arg5[%c0_14, %c0_15] : memref<32x128xf32, #tpu.memory_space<vmem>>, vector<32x128xf32>
      tpu.vector_store %arg5[%c0_14, %c0_15], %14 {strides = array<i32>} : memref<32x128xf32, #tpu.memory_space<vmem>>, vector<32x128xf32>,
    } else {
    }
    %cst = arith.constant 0.000000e+00 : f32
    %3 = vector.broadcast %cst : f32 to vector<32x128xf32>
    %c0_i32_1 = arith.constant 0 : i32
    %c2_i32 = arith.constant 2 : i32
    %4 = arith.addi %c0_i32_1, %c2_i32 : i32
    %c1_i32 = arith.constant 1 : i32
    %5:2 = scf.for %arg6 = %c0_i32_1 to %4 step %c1_i32 iter_args(%arg7 = %3, %arg8 = %3) -> (vector<32x128xf32>, vector<32x128xf32>)  : i32 {
      %c32_i32 = arith.constant 32 : i32
      %12 = arith.muli %arg6, %c32_i32 : i32
      %13 = tpu.assume_multiple %12, 32 : i32
      %14 = arith.index_cast %13 : i32 to index
      %c0_10 = arith.constant 0 : index
      %15 = vector.load %arg2[%14, %c0_10] : memref<64x128xf32, #tpu.memory_space<vmem>>, vector<32x128xf32>
      %16 = arith.index_cast %13 : i32 to index
      %c0_11 = arith.constant 0 : index
      %17 = vector.load %arg3[%16, %c0_11] : memref<64x128xf32, #tpu.memory_space<vmem>>, vector<32x128xf32>
      %18 = arith.mulf %15, %17 : vector<32x128xf32>
      %19 = arith.addf %arg7, %18 : vector<32x128xf32>
      %20 = arith.addf %arg8, %15 : vector<32x128xf32>
      %21 = arith.addf %20, %17 : vector<32x128xf32>
      scf.yield %19, %21 : vector<32x128xf32>, vector<32x128xf32>
    }
    %c2_i32_2 = arith.constant 2 : i32
    %c0 = arith.constant 0 : index
    %c0_3 = arith.constant 0 : index
    %6 = vector.load %arg4[%c0, %c0_3] : memref<32x128xf32, #tpu.memory_space<vmem>>, vector<32x128xf32>
    %7 = arith.addf %6, %5#0 : vector<32x128xf32>
    %c0_4 = arith.constant 0 : index
    %c0_5 = arith.constant 0 : index
    %8 = vector.load %arg4[%c0_4, %c0_5] : memref<32x128xf32, #tpu.memory_space<vmem>>, vector<32x128xf32>
    tpu.vector_store %arg4[%c0_4, %c0_5], %7 {strides = array<i32>} : memref<32x128xf32, #tpu.memory_space<vmem>>, vector<32x128xf32>,
    %c0_6 = arith.constant 0 : index
    %c0_7 = arith.constant 0 : index
    %9 = vector.load %arg5[%c0_6, %c0_7] : memref<32x128xf32, #tpu.memory_space<vmem>>, vector<32x128xf32>
    %10 = arith.addf %9, %5#1 : vector<32x128xf32>
    %c0_8 = arith.constant 0 : index
    %c0_9 = arith.constant 0 : index
    %11 = vector.load %arg5[%c0_8, %c0_9] : memref<32x128xf32, #tpu.memory_space<vmem>>, vector<32x128xf32>
    tpu.vector_store %arg5[%c0_8, %c0_9], %10 {strides = array<i32>} : memref<32x128xf32, #tpu.memory_space<vmem>>, vector<32x128xf32>,
    return
  }
  func.func @transform_0(%arg0: i32, %arg1: i32) -> (i32, i32) {
    %c1_i32 = arith.constant 1 : i32
    %0 = arith.muli %arg0, %c1_i32 : i32
    %1 = arith.addi %0, %arg1 : i32
    %c0_i32 = arith.constant 0 : i32
    %c0_i32_0 = arith.constant 0 : i32
    return %1, %c0_i32 : i32, i32
  }
  func.func @transform_1(%arg0: i32, %arg1: i32) -> (i32, i32) {
    %c1_i32 = arith.constant 1 : i32
    %0 = arith.muli %arg0, %c1_i32 : i32
    %1 = arith.addi %0, %arg1 : i32
    %c0_i32 = arith.constant 0 : i32
    %c0_i32_0 = arith.constant 0 : i32
    return %1, %c0_i32 : i32, i32
  }
  func.func @transform_2(%arg0: i32, %arg1: i32) -> (i32, i32) {
    %c0_i32 = arith.constant 0 : i32
    %c0_i32_0 = arith.constant 0 : i32
    return %arg0, %c0_i32 : i32, i32
  }
  func.func @transform_3(%arg0: i32, %arg1: i32) -> (i32, i32) {
    %c0_i32 = arith.constant 0 : i32
    %c0_i32_0 = arith.constant 0 : i32
    return %arg0, %c0_i32 : i32, i32
  }
}

</mosaic_0001>

<llo_original>
// kernel: tpu_custom_call.1
$region0: #{tpu_custom_call.1}
  #allocation0 [shape = 'u32[]', space=smem, size = 0x4, offset = 0x4, fixed_abs, tag = 'smem constant byte address 0x4 - core index']
  #allocation1 [shape = 'u32[72,128]{1,0:T(1,128)}', space=vmem, size = 0x9000, scoped, tag = 'internal scratch']
  %s0 = inlined_call_operand.hbm [shape: f32[64,128], index: 0, kind: input, shape index: {}]
  %s1 = inlined_call_operand.hbm [shape: f32[64,128], index: 1, kind: input, shape index: {}]
  %s2 = inlined_call_operand.hbm [shape: f32[32,128], index: 2, kind: output, shape index: {0}]
  %s3 = inlined_call_operand.hbm [shape: f32[32,128], index: 3, kind: output, shape index: {1}]
  %4 = xla_tuple %s2, %s3
  %s5 = sld [smem:[#allocation0]]
  $region45: #{tpu_custom_call.1} parent=0
    _
  %s7 = ssub.s32 1, %s5
  %s8 = scalar_select 0, %s7, %s5
  $region1: #{tpu_custom_call.1} parent=0
    #allocation2 [shape = 'u8[32768]{0}', space=vmem, size = 0x8000, scoped, tag = 'input window, operand 0, single buffered']
    #allocation3 [shape = 's32[1]{0}', space=sflag, size = 0x4, scoped, tag = 'scoped memory for tpu_custom_call.1']
    #allocation4 [shape = 's32[1]{0}', space=sflag, size = 0x4, scoped, tag = 'scoped memory for tpu_custom_call.1']
    #allocation5 [shape = 'u8[32768]{0}', space=vmem, size = 0x8000, scoped, tag = 'input window, operand 1, single buffered']
    #allocation6 [shape = 's32[1]{0}', space=sflag, size = 0x4, scoped, tag = 'scoped memory for tpu_custom_call.1']
    #allocation7 [shape = 'u8[16384]{0}', space=vmem, size = 0x4000, scoped, tag = 'output window, operand 0, single buffered']
    #allocation8 [shape = 'u8[16384]{0}', space=vmem, size = 0x4000, scoped, tag = 'output window, operand 1, single buffered']
    #allocation9 [shape = 's32[1]{0}', space=sflag, size = 0x4, scoped, tag = 'scoped memory for tpu_custom_call.1']
    %9 = vsyncpa [#allocation3], 0
    %10 = vsyncpa [#allocation6], 0
    %11 = vsyncpa [#allocation4], 0
    %12 = vsyncpa [#allocation9], 0
    // Predicated region
    $region2: #{tpu_custom_call.1} parent=1 // pred_check
      _
    $region3: #{tpu_custom_call.1} parent=1 // pred_check_branch
      %14 = sbr.rel (0) target = $region5
    $region4: #{tpu_custom_call.1} parent=1 // pred_region
      %s15 = sadd.s32 0, 0
      %s16 = smul.u32 8, %s15
      %18 = vsyncadd [#allocation3], 0
      %s19 = smul.addr %s16, 8
      %s20 = scalar_lea.hbm %s0, %s19
      %s21 = sshll.u32 %s20, 4
      %s22 = int_to_ptr.hbm [resolvable:$true] %s21
      %s23 = sshll.u32 [#allocation2], 4
      %s24 = int_to_ptr.vmem [resolvable:$true] %s23
      %29 = dma.hbm_to_vmem [thread:$0]  %s22, 1024, %s24, [#allocation3], 128, 128, 8
    $region5: #{tpu_custom_call.1} parent=1 // pred_fallthru
      _
    // Predicated region
    $region6: #{tpu_custom_call.1} parent=1 // pred_check
      _
    $region7: #{tpu_custom_call.1} parent=1 // pred_check_branch
      %31 = sbr.rel (0) target = $region9
    $region8: #{tpu_custom_call.1} parent=1 // pred_region
      %s32 = sadd.s32 0, 0
      %s33 = smul.u32 8, %s32
      %35 = vsyncadd [#allocation6], 0
      %s36 = smul.addr %s33, 8
      %s37 = scalar_lea.hbm %s1, %s36
      %s38 = sshll.u32 %s37, 4
      %s39 = int_to_ptr.hbm [resolvable:$true] %s38
      %s40 = sshll.u32 [#allocation5], 4
      %s41 = int_to_ptr.vmem [resolvable:$true] %s40
      %46 = dma.hbm_to_vmem [thread:$0]  %s39, 1024, %s41, [#allocation6], 128, 128, 8
    $region9: #{tpu_custom_call.1} parent=1 // pred_fallthru
      _
    // Predicated region
    $region10: #{tpu_custom_call.1} parent=1 // pred_check
      _
    $region11: #{tpu_custom_call.1} parent=1 // pred_check_branch
      %48 = sbr.rel (0) target = $region13
    $region12: #{tpu_custom_call.1} parent=1 // pred_region
      %50 = dma.done [#allocation3], 1024
    $region13: #{tpu_custom_call.1} parent=1 // pred_fallthru
      _
    // Predicated region
    $region14: #{tpu_custom_call.1} parent=1 // pred_check
      _
    $region15: #{tpu_custom_call.1} parent=1 // pred_check_branch
      %52 = sbr.rel (0) target = $region17
    $region16: #{tpu_custom_call.1} parent=1 // pred_region
      %54 = dma.done [#allocation6], 1024
    $region17: #{tpu_custom_call.1} parent=1 // pred_fallthru
      _
    %s55 = sadd.s32 0, 0
    %s56 = smul.u32 8, %s55
    %s57 = sadd.s32 0, 0
    %s58 = smul.u32 8, %s57
    %p59 = scmp.eq.s32.totalorder 0, 0
    // Predicated region
    $region18: #{tpu_custom_call.1} parent=1 // pred_check
      %p60 = pneg %p59
    $region19: #{tpu_custom_call.1} parent=1 // pred_check_branch
      %62 = sbr.rel (%p60) target = $region21
    $region20: #{tpu_custom_call.1} parent=1 // pred_region
      %63 = vst [vmem:[#allocation7] sm:$0xff] 0.0
      %64 = vst [vmem:[#allocation7 + $0x8] sm:$0xff] 0.0
      %65 = vst [vmem:[#allocation7 + $0x10] sm:$0xff] 0.0
      %66 = vst [vmem:[#allocation7 + $0x18] sm:$0xff] 0.0
      %67 = vst [vmem:[#allocation8] sm:$0xff] 0.0
      %68 = vst [vmem:[#allocation8 + $0x8] sm:$0xff] 0.0
      %69 = vst [vmem:[#allocation8 + $0x10] sm:$0xff] 0.0
      %70 = vst [vmem:[#allocation8 + $0x18] sm:$0xff] 0.0
    $region21: #{tpu_custom_call.1} parent=1 // pred_fallthru
      _
    loop: start=0, step=1, limit=2
    $region22: #{tpu_custom_call.1} parent=1 // loop_pre_header
      _
    $region23: #{tpu_custom_call.1} parent=1 // loop_header
      %s72 = sphi 0, %s76
      %p73 = scmp.ge.s32.totalorder %s72, 2
      %v77 = vphi 0.0, %v100
      %v78 = vphi 0.0, %v101
      %v79 = vphi 0.0, %v102
      %v80 = vphi 0.0, %v103
      %v81 = vphi 0.0, %v108
      %v82 = vphi 0.0, %v109
      %v83 = vphi 0.0, %v110
      %v84 = vphi 0.0, %v111
    $region24: #{tpu_custom_call.1} parent=1 // loop_header_branch
      %75 = sbr.rel (%p73) target = $region28
    $region25: #{tpu_custom_call.1} parent=1 // loop_body
      %s85 = smul.u32 %s72, 32
      %s86 = scalar_lea.vmem [#allocation2], %s85
      %v87 = vld [vmem:[%s86] sm:$0xff]
      %v88 = vld [vmem:[%s86 + $0x8] sm:$0xff]
      %v89 = vld [vmem:[%s86 + $0x10] sm:$0xff]
      %v90 = vld [vmem:[%s86 + $0x18] sm:$0xff]
      %s91 = scalar_lea.vmem [#allocation5], %s85
      %v92 = vld [vmem:[%s91] sm:$0xff]
      %v93 = vld [vmem:[%s91 + $0x8] sm:$0xff]
      %v94 = vld [vmem:[%s91 + $0x10] sm:$0xff]
      %v95 = vld [vmem:[%s91 + $0x18] sm:$0xff]
      %v96 = vmul.f32 %v87, %v92
      %v97 = vmul.f32 %v88, %v93
      %v98 = vmul.f32 %v89, %v94
      %v99 = vmul.f32 %v90, %v95
      %v100 = vadd.f32 %v77, %v96
      %v101 = vadd.f32 %v78, %v97
      %v102 = vadd.f32 %v79, %v98
      %v103 = vadd.f32 %v80, %v99
      %v104 = vadd.f32 %v81, %v87
      %v105 = vadd.f32 %v82, %v88
      %v106 = vadd.f32 %v83, %v89
      %v107 = vadd.f32 %v84, %v90
      %v108 = vadd.f32 %v104, %v92
      %v109 = vadd.f32 %v105, %v93
      %v110 = vadd.f32 %v106, %v94
      %v111 = vadd.f32 %v107, %v95
    $region26: #{tpu_custom_call.1} parent=1 // loop_footer
      %s76 = sadd.s32 1, %s72
    $region27: #{tpu_custom_call.1} parent=1 // loop_footer_branch
      %71 = sbr.rel target = $region23
    $region28: #{tpu_custom_call.1} parent=1 // loop_exit
      _
    %v112 = vld [vmem:[#allocation7] sm:$0xff]
    %v113 = vld [vmem:[#allocation7 + $0x8] sm:$0xff]
    %v114 = vld [vmem:[#allocation7 + $0x10] sm:$0xff]
    %v115 = vld [vmem:[#allocation7 + $0x18] sm:$0xff]
    %v116 = vadd.f32 %v112, %v77
    %v117 = vadd.f32 %v113, %v78
    %v118 = vadd.f32 %v114, %v79
    %v119 = vadd.f32 %v115, %v80
    %120 = vst [vmem:[#allocation7] sm:$0xff] %v116
    %121 = vst [vmem:[#allocation7 + $0x8] sm:$0xff] %v117
    %122 = vst [vmem:[#allocation7 + $0x10] sm:$0xff] %v118
    %123 = vst [vmem:[#allocation7 + $0x18] sm:$0xff] %v119
    %v124 = vld [vmem:[#allocation8] sm:$0xff]
    %v125 = vld [vmem:[#allocation8 + $0x8] sm:$0xff]
    %v126 = vld [vmem:[#allocation8 + $0x10] sm:$0xff]
    %v127 = vld [vmem:[#allocation8 + $0x18] sm:$0xff]
    %v128 = vadd.f32 %v124, %v81
    %v129 = vadd.f32 %v125, %v82
    %v130 = vadd.f32 %v126, %v83
    %v131 = vadd.f32 %v127, %v84
    %132 = vst [vmem:[#allocation8] sm:$0xff] %v128
    %133 = vst [vmem:[#allocation8 + $0x8] sm:$0xff] %v129
    %134 = vst [vmem:[#allocation8 + $0x10] sm:$0xff] %v130
    %135 = vst [vmem:[#allocation8 + $0x18] sm:$0xff] %v131
    // Predicated region
    $region29: #{tpu_custom_call.1} parent=1 // pred_check
      _
    $region30: #{tpu_custom_call.1} parent=1 // pred_check_branch
      %137 = sbr.rel (0) target = $region32
    $region31: #{tpu_custom_call.1} parent=1 // pred_region
      %139 = vsyncadd [#allocation4], 0
      %s140 = sshll.u32 [#allocation7], 4
      %s141 = int_to_ptr.vmem [resolvable:$true] %s140
      %s142 = sshll.u32 %s2, 4
      %s143 = int_to_ptr.hbm [resolvable:$true] %s142
      %148 = dma.vmem_to_hbm [thread:$0]  %s141, 512, %s143, [#allocation4], 128, 128, 8
    $region32: #{tpu_custom_call.1} parent=1 // pred_fallthru
      _
    // Predicated region
    $region33: #{tpu_custom_call.1} parent=1 // pred_check
      _
    $region34: #{tpu_custom_call.1} parent=1 // pred_check_branch
      %150 = sbr.rel (0) target = $region36
    $region35: #{tpu_custom_call.1} parent=1 // pred_region
      %152 = vsyncadd [#allocation9], 0
      %s153 = sshll.u32 [#allocation8], 4
      %s154 = int_to_ptr.vmem [resolvable:$true] %s153
      %s155 = sshll.u32 %s3, 4
      %s156 = int_to_ptr.hbm [resolvable:$true] %s155
      %161 = dma.vmem_to_hbm [thread:$0]  %s154, 512, %s156, [#allocation9], 128, 128, 8
    $region36: #{tpu_custom_call.1} parent=1 // pred_fallthru
      _
    // Predicated region
    $region37: #{tpu_custom_call.1} parent=1 // pred_check
      _
    $region38: #{tpu_custom_call.1} parent=1 // pred_check_branch
      %163 = sbr.rel (0) target = $region40
    $region39: #{tpu_custom_call.1} parent=1 // pred_region
      %165 = dma.done [#allocation4], 512
    $region40: #{tpu_custom_call.1} parent=1 // pred_fallthru
      _
    // Predicated region
    $region41: #{tpu_custom_call.1} parent=1 // pred_check
      _
    $region42: #{tpu_custom_call.1} parent=1 // pred_check_branch
      %167 = sbr.rel (0) target = $region44
    $region43: #{tpu_custom_call.1} parent=1 // pred_region
      %169 = dma.done [#allocation9], 512
    $region44: #{tpu_custom_call.1} parent=1 // pred_fallthru
      _
    %170 = vsyncpa [#allocation3], 1
    %171 = vsyncpa [#allocation6], 1
    %172 = vsyncpa [#allocation4], 1
    %173 = vsyncpa [#allocation9], 1

</llo_original>
